<compile_context>
chip_gen: v5e
topology: v5e:2x2
jax: 0.10.0
libtpu: 0.0.40
codegen_flags: <defaults>
</compile_context>

<pallas_src>
import jax
import jax.numpy as jnp
from jax import lax
from jax.experimental import pallas as pl
from jax.experimental.pallas import tpu as pltpu


def _fm_kernel_gram(w0_ref, x_ref, w1_ref, g_ref, o_ref):
    """out = w0 + rowsum( x * (w1_row + x @ G_half) ), emitted as [1, TB]."""
    x = x_ref[...]                                            # [TB, F] (streamed)
    xg = jnp.dot(x, g_ref[...],
                 preferred_element_type=jnp.float32)          # [TB, F] (MXU)
    m = x * (w1_ref[...] + xg)                                # [TB, F] (VPU)
    # Lane-dense row reduction: ones[1,F] contracted with m's F axis -> [1,TB]
    # straight off the MXU (avoids a [TB,1] sublane column + masked stores).
    ones_f = jnp.ones((1, x.shape[1]), jnp.float32)
    row = lax.dot_general(ones_f, m, (((1,), (1,)), ((), ())),
                          preferred_element_type=jnp.float32)  # [1, TB]
    o_ref[...] = (w0_ref[0, 0] + row).reshape(o_ref.shape)


def _fm_kernel_padded(w0_ref, x_ref, w1s_ref, w2p_ref, o_ref):
    """General-D path: lane-padded w2 dot + fused linear/diagonal VPU pass."""
    x = x_ref[...]                                            # [TB, F]
    w1_row = w1s_ref[0:1, :]                                  # [1, F]
    sh_row = w1s_ref[1:2, :]                                  # [1, F] = 0.5*rowsum(w2^2)
    lin = x * (w1_row - x * sh_row)                           # [TB, F]
    xw2 = jnp.dot(x, w2p_ref[...],
                  preferred_element_type=jnp.float32)         # [TB, Dp]
    sq = xw2 * xw2                                            # [TB, Dp]
    ones_f = jnp.ones((1, lin.shape[1]), jnp.float32)
    half_d = jnp.full((1, sq.shape[1]), 0.5, jnp.float32)     # folds the 0.5
    row = (lax.dot_general(ones_f, lin, (((1,), (1,)), ((), ())),
                           preferred_element_type=jnp.float32)
           + lax.dot_general(half_d, sq, (((1,), (1,)), ((), ())),
                             preferred_element_type=jnp.float32))   # [1, TB]
    o_ref[...] = (w0_ref[0, 0] + row).reshape(o_ref.shape)


def _pick_batch_tile(B, cap=2048, min_tile=8, target_steps=4):
    """Aim for ~target_steps grid steps (pipeline depth / both v7x cores) with
    tiles as large as possible (big x DMAs), capped well under VMEM limits."""
    tb = -(-B // target_steps)                 # cdiv(B, target_steps)
    tb = -(-tb // min_tile) * min_tile         # round up to sublane multiple
    return max(min_tile, min(cap, tb))


def fm_forward(x, w0, w1, w2):
    B, F = x.shape
    Fw, D = w2.shape
    assert Fw == F

    xf = x.astype(jnp.float32)
    w1f = jnp.asarray(w1, jnp.float32)
    w2f = jnp.asarray(w2, jnp.float32)
    w0_s = jnp.asarray(w0, jnp.float32).reshape(1, 1)

    # --- batch tiling: cdiv grid + zero-padded tail (no divisibility cliffs) ---
    TB = _pick_batch_tile(B)
    nb = pl.cdiv(B, TB)
    b_pad = nb * TB
    if b_pad != B:
        xf = jnp.pad(xf, ((0, b_pad - B), (0, 0)))   # padded rows sliced off below

    # --- one-time weight prep (outside the per-grid-step path) ---
    dp = ((D + 127) // 128) * 128                    # lane-padded embedding dim
    use_gram = dp > F                                # D << F  ->  Gram form wins

    if use_gram:
        w1_row = w1f.reshape(1, F)
        g = w2f @ w2f.T                              # [F, F]
        g_half = 0.5 * (g - jnp.diag(jnp.diag(g)))   # 0.5 * off-diagonal Gram
        kernel = _fm_kernel_gram
        w_args = (w1_row, g_half)
        w_specs = [pl.BlockSpec((1, F), lambda b: (0, 0)),     # resident
                   pl.BlockSpec((F, F), lambda b: (0, 0))]     # resident
    else:
        w1s = jnp.stack([w1f.reshape(F),
                         0.5 * jnp.sum(w2f * w2f, axis=1)], axis=0)    # [2, F]
        w2p = jnp.zeros((F, dp), jnp.float32).at[:, :D].set(w2f)       # [F, Dp]
        kernel = _fm_kernel_padded
        w_args = (w1s, w2p)
        w_specs = [pl.BlockSpec((2, F), lambda b: (0, 0)),     # resident
                   pl.BlockSpec((F, dp), lambda b: (0, 0))]    # resident

    out3d = pl.pallas_call(
        kernel,
        out_shape=jax.ShapeDtypeStruct((nb, 1, TB), jnp.float32),
        grid_spec=pltpu.PrefetchScalarGridSpec(
            num_scalar_prefetch=0,
            grid=(nb,),
            in_specs=[
                pl.BlockSpec(memory_space=pltpu.SMEM),         # w0 [1,1] scalar
                pl.BlockSpec((TB, F), lambda b: (b, 0)),       # x   streamed
                *w_specs,                                      # weights resident
            ],
            out_specs=pl.BlockSpec((1, 1, TB), lambda b: (b, 0, 0)),   # lane-dense
        ),
        compiler_params=pltpu.CompilerParams(
            dimension_semantics=("parallel",)),
    )(w0_s, xf, *w_args)

    return out3d.reshape(b_pad, 1)[:B]


def fm_reference(x, w0, w1, w2):
    first = x @ w1
    second = 0.5 * jnp.sum((x @ w2) ** 2 - (x * x) @ (w2 * w2),
                           axis=1, keepdims=True)
    return jnp.reshape(w0, ()) + first + second


if __name__ == "__main__":
    # Small shapes consistent with the module: batch=8, num_embeddings=32,
    # embedding_dim=16.
    B, NUM_EMB, EMB_DIM = 8, 32, 16
    key = jax.random.PRNGKey(0)
    kx, k1, k2 = jax.random.split(key, 3)

    x = jax.random.normal(kx, (B, NUM_EMB), dtype=jnp.float32)

    # Deterministic parameter init mirroring the module's __init__:
    #   w0 = zeros([1]); w1, w2 ~ xavier_normal_
    w0 = jnp.zeros((1,), dtype=jnp.float32)
    std1 = (2.0 / (NUM_EMB + 1)) ** 0.5
    std2 = (2.0 / (NUM_EMB + EMB_DIM)) ** 0.5
    w1 = std1 * jax.random.normal(k1, (NUM_EMB, 1), dtype=jnp.float32)
    w2 = std2 * jax.random.normal(k2, (NUM_EMB, EMB_DIM), dtype=jnp.float32)

    out = fm_forward(x, w0, w1, w2)
    jax.block_until_ready(out)
    ref = fm_reference(x, w0, w1, w2)
    assert out.shape == (B, 1)
    assert jnp.allclose(out, ref, atol=1e-4, rtol=1e-4), "mismatch vs reference"

    # Ragged batch: exercises cdiv grid, zero-padded tail, multi-step pipeline.
    B2 = 300
    x2 = jax.random.normal(jax.random.PRNGKey(1), (B2, NUM_EMB), dtype=jnp.float32)
    out2 = fm_forward(x2, w0, w1, w2)
    jax.block_until_ready(out2)
    ref2 = fm_reference(x2, w0, w1, w2)
    assert out2.shape == (B2, 1)
    assert jnp.allclose(out2, ref2, atol=1e-4, rtol=1e-4), "mismatch (ragged B)"

    print("KERNEL_OK")
</pallas_src>

<mosaic_0001>
module attributes {stable_mosaic.version = 11 : i64} {
  func.func @_fm_kernel_gram(%arg0: i32, %arg1: memref<1x1xf32, #tpu.memory_space<smem>>, %arg2: memref<8x32xf32, #tpu.memory_space<vmem>>, %arg3: memref<1x32xf32, #tpu.memory_space<vmem>>, %arg4: memref<32x32xf32, #tpu.memory_space<vmem>>, %arg5: memref<1x1x8xf32, #tpu.memory_space<vmem>>) attributes {dimension_semantics = [#tpu.dimension_semantics<parallel>], iteration_bounds = array<i64: 1>, scalar_prefetch = 0 : i64, scratch_operands = 0 : i64, tpu.core_type = #tpu.core_type<tc>, window_params = [{transform_indices = @transform_0, window_bounds = array<i64: 1, 1>}, {transform_indices = @transform_1, window_bounds = array<i64: 8, 32>}, {pipeline_mode = #tpu.pipeline_mode<synchronous>, transform_indices = @transform_2, window_bounds = array<i64: 1, 32>}, {pipeline_mode = #tpu.pipeline_mode<synchronous>, transform_indices = @transform_3, window_bounds = array<i64: 32, 32>}, {transform_indices = @transform_4, window_bounds = array<i64: 1, 1, 8>}]} {
    %c0 = arith.constant 0 : index
    %c0_0 = arith.constant 0 : index
    %0 = vector.load %arg2[%c0, %c0_0] : memref<8x32xf32, #tpu.memory_space<vmem>>, vector<8x32xf32>
    %c0_1 = arith.constant 0 : index
    %c0_2 = arith.constant 0 : index
    %1 = vector.load %arg4[%c0_1, %c0_2] : memref<32x32xf32, #tpu.memory_space<vmem>>, vector<32x32xf32>
    %cst = arith.constant dense<0.000000e+00> : vector<8x32xf32>
    %2 = tpu.matmul %0, %1, %cst {dimension_numbers = #tpu.dot_dimension_numbers<[1], [0], [0], [1], [0, 0, 1, 1], [], []>} : vector<8x32xf32>, vector<32x32xf32>, vector<8x32xf32> -> vector<8x32xf32>
    %c0_3 = arith.constant 0 : index
    %c0_4 = arith.constant 0 : index
    %3 = vector.load %arg3[%c0_3, %c0_4] : memref<1x32xf32, #tpu.memory_space<vmem>>, vector<1x32xf32>
    %4 = vector.broadcast %3 : vector<1x32xf32> to vector<8x32xf32>
    %5 = arith.addf %4, %2 : vector<8x32xf32>
    %6 = arith.mulf %0, %5 : vector<8x32xf32>
    %cst_5 = arith.constant 1.000000e+00 : f32
    %7 = vector.broadcast %cst_5 : f32 to vector<1x32xf32>
    %cst_6 = arith.constant dense<0.000000e+00> : vector<1x8xf32>
    %8 = tpu.matmul %7, %6, %cst_6 {dimension_numbers = #tpu.dot_dimension_numbers<[1], [1], [0], [0], [0, 0, 1, 0], [], []>} : vector<1x32xf32>, vector<8x32xf32>, vector<1x8xf32> -> vector<1x8xf32>
    %c0_7 = arith.constant 0 : index
    %c0_8 = arith.constant 0 : index
    %9 = memref.load %arg1[%c0_7, %c0_8] : memref<1x1xf32, #tpu.memory_space<smem>>
    %10 = vector.broadcast %9 : f32 to vector<1x8xf32>
    %11 = arith.addf %10, %8 : vector<1x8xf32>
    %12 = vector.shape_cast %11 : vector<1x8xf32> to vector<1x1x8xf32>
    %c0_9 = arith.constant 0 : index
    %c0_10 = arith.constant 0 : index
    %c0_11 = arith.constant 0 : index
    %13 = vector.load %arg5[%c0_9, %c0_10, %c0_11] : memref<1x1x8xf32, #tpu.memory_space<vmem>>, vector<1x1x8xf32>
    tpu.vector_store %arg5[%c0_9, %c0_10, %c0_11], %12 {strides = array<i32>} : memref<1x1x8xf32, #tpu.memory_space<vmem>>, vector<1x1x8xf32>,
    return
  }
  func.func @transform_0(%arg0: i32) -> (i32, i32) {
    %c0_i32 = arith.constant 0 : i32
    %c0_i32_0 = arith.constant 0 : i32
    %c0_i32_1 = arith.constant 0 : i32
    return %c0_i32, %c0_i32_0 : i32, i32
  }
  func.func @transform_1(%arg0: i32) -> (i32, i32) {
    %c0_i32 = arith.constant 0 : i32
    %c0_i32_0 = arith.constant 0 : i32
    return %arg0, %c0_i32 : i32, i32
  }
  func.func @transform_2(%arg0: i32) -> (i32, i32) {
    %c0_i32 = arith.constant 0 : i32
    %c0_i32_0 = arith.constant 0 : i32
    %c0_i32_1 = arith.constant 0 : i32
    return %c0_i32, %c0_i32_0 : i32, i32
  }
  func.func @transform_3(%arg0: i32) -> (i32, i32) {
    %c0_i32 = arith.constant 0 : i32
    %c0_i32_0 = arith.constant 0 : i32
    %c0_i32_1 = arith.constant 0 : i32
    return %c0_i32, %c0_i32_0 : i32, i32
  }
  func.func @transform_4(%arg0: i32) -> (i32, i32, i32) {
    %c0_i32 = arith.constant 0 : i32
    %c0_i32_0 = arith.constant 0 : i32
    %c0_i32_1 = arith.constant 0 : i32
    return %arg0, %c0_i32, %c0_i32_0 : i32, i32, i32
  }
}

</mosaic_0001>

<llo_original>
// kernel: tpu_custom_call.1
$region0: #{tpu_custom_call.1}
  #allocation0 [shape = 'u32[]', space=smem, size = 0x4, offset = 0x4, fixed_abs, tag = 'smem constant byte address 0x4 - core index']
  #allocation1 [shape = 'u32[72,128]{1,0:T(1,128)}', space=vmem, size = 0x9000, scoped, tag = 'internal scratch']
  #allocation2 [shape = 'f32[1,1]{1,0:T(1,128)S(6)}', space=smem, size = 0x200, scoped, tag = 'scoped memory for tpu_custom_call.1']
  %s0 = inlined_call_operand.<no memory space> [shape: f32[1,1], index: 0, kind: input, shape index: {}]
  %s1 = inlined_call_operand.hbm [shape: f32[8,32], index: 1, kind: input, shape index: {}]
  %s2 = inlined_call_operand.vmem [shape: f32[1,32], index: 2, kind: input, shape index: {}]
  %s3 = inlined_call_operand.hbm [shape: f32[32,32], index: 3, kind: input, shape index: {}]
  %s4 = inlined_call_operand.hbm [shape: f32[1,1,8], index: 4, kind: output, shape index: {}]
  %s5 = sld [smem:[#allocation0]]
  $region34: #{tpu_custom_call.1} parent=0
    _
  %s7 = ssub.s32 1, %s5
  %s8 = scalar_select 0, %s7, %s5
  %9 = sst [smem:[#allocation2]] %s0
  $region1: #{tpu_custom_call.1} parent=0
    #allocation3 [shape = 'u8[4096]{0}', space=vmem, size = 0x1000, scoped, tag = 'input window, operand 1, single buffered']
    #allocation4 [shape = 's32[1]{0}', space=sflag, size = 0x4, scoped, tag = 'scoped memory for tpu_custom_call.1']
    #allocation5 [shape = 's32[1]{0}', space=sflag, size = 0x4, scoped, tag = 'scoped memory for tpu_custom_call.1']
    #allocation6 [shape = 'u8[16384]{0}', space=vmem, size = 0x4000, scoped, tag = 'input window, operand 3, single buffered']
    #allocation7 [shape = 's32[1]{0}', space=sflag, size = 0x4, scoped, tag = 'scoped memory for tpu_custom_call.1']
    #allocation8 [shape = 'u8[512]{0}', space=vmem, size = 0x400, scoped, tag = 'output window, operand 0, single buffered']
    %10 = vsyncpa [#allocation4], 0
    %11 = vsyncpa [#allocation7], 0
    %12 = vsyncpa [#allocation5], 0
    // Predicated region
    $region2: #{tpu_custom_call.1} parent=1 // pred_check
      _
    $region3: #{tpu_custom_call.1} parent=1 // pred_check_branch
      %14 = sbr.rel (0) target = $region5
    $region4: #{tpu_custom_call.1} parent=1 // pred_region
      _
    $region5: #{tpu_custom_call.1} parent=1 // pred_fallthru
      _
    // Predicated region
    $region6: #{tpu_custom_call.1} parent=1 // pred_check
      _
    $region7: #{tpu_custom_call.1} parent=1 // pred_check_branch
      %16 = sbr.rel (0) target = $region9
    $region8: #{tpu_custom_call.1} parent=1 // pred_region
      %18 = vsyncadd [#allocation4], 0
      %s20 = sshll.u32 %s1, 4
      %s21 = int_to_ptr.hbm [resolvable:$true] %s20
      %s22 = sshll.u32 [#allocation3], 4
      %s23 = int_to_ptr.vmem [resolvable:$true] %s22
      %25 = dma.hbm_to_vmem [thread:$0]  %s21, 128, %s23, [#allocation4]
    $region9: #{tpu_custom_call.1} parent=1 // pred_fallthru
      _
    // Predicated region
    $region10: #{tpu_custom_call.1} parent=1 // pred_check
      _
    $region11: #{tpu_custom_call.1} parent=1 // pred_check_branch
      %27 = sbr.rel (0) target = $region13
    $region12: #{tpu_custom_call.1} parent=1 // pred_region
      _
    $region13: #{tpu_custom_call.1} parent=1 // pred_fallthru
      _
    // Predicated region
    $region14: #{tpu_custom_call.1} parent=1 // pred_check
      _
    $region15: #{tpu_custom_call.1} parent=1 // pred_check_branch
      %29 = sbr.rel (0) target = $region17
    $region16: #{tpu_custom_call.1} parent=1 // pred_region
      %31 = vsyncadd [#allocation7], 0
      %s32 = sshll.u32 %s3, 4
      %s33 = int_to_ptr.hbm [resolvable:$true] %s32
      %s34 = sshll.u32 [#allocation6], 4
      %s35 = int_to_ptr.vmem [resolvable:$true] %s34
      %40 = dma.hbm_to_vmem [thread:$0]  %s33, 512, %s35, [#allocation7], 128, 128, 8
    $region17: #{tpu_custom_call.1} parent=1 // pred_fallthru
      _
    // Predicated region
    $region18: #{tpu_custom_call.1} parent=1 // pred_check
      _
    $region19: #{tpu_custom_call.1} parent=1 // pred_check_branch
      %42 = sbr.rel (0) target = $region21
    $region20: #{tpu_custom_call.1} parent=1 // pred_region
      %44 = dma.done [#allocation4], 128
    $region21: #{tpu_custom_call.1} parent=1 // pred_fallthru
      _
    // Predicated region
    $region22: #{tpu_custom_call.1} parent=1 // pred_check
      _
    $region23: #{tpu_custom_call.1} parent=1 // pred_check_branch
      %46 = sbr.rel (0) target = $region25
    $region24: #{tpu_custom_call.1} parent=1 // pred_region
      %48 = dma.done [#allocation7], 512
    $region25: #{tpu_custom_call.1} parent=1 // pred_fallthru
      _
    %v49 = vld [vmem:[#allocation3] sm:$0xff]
    %v50 = vld [vmem:[#allocation6] sm:$0xff]
    %v51 = vld [vmem:[#allocation6 + $0x8] sm:$0xff]
    %v52 = vld [vmem:[#allocation6 + $0x10] sm:$0xff]
    %v53 = vld [vmem:[#allocation6 + $0x18] sm:$0xff]
    %vm54 = vcmask 261120
    %v56 = vsel %vm54, %v49, 0
    %58 = vmatpush.msra.mxu0 0.0
    %59 = vmatpush.msra.mxu0 0.0
    %60 = vmatpush.msra.mxu0 0.0
    %61 = vmatpush.msra.mxu0 0.0
    %62 = vmatpush.msra.mxu0 0.0
    %63 = vmatpush.msra.mxu0 0.0
    %64 = vmatpush.msra.mxu0 0.0
    %65 = vmatpush.msra.mxu0 0.0
    %66 = vmatpush.msra.mxu0 0.0
    %67 = vmatpush.msra.mxu0 0.0
    %68 = vmatpush.msra.mxu0 0.0
    %69 = vmatpush.msra.mxu0 0.0
    %70 = vmatpush.msra.mxu0 %v53
    %71 = vmatpush.msra.mxu0 %v52
    %72 = vmatpush.msra.mxu0 %v51
    %73 = vmatpush.msra.mxu0 %v50
    %74 = vmatmul.f32.gmra.mxu0 %v56
    %v75 = vpop.f32.mrf.mxu0
    %v76 = vadd.f32 0.0, %v75
    %77 = vdwg.mxu0
    %v78 = vld [vmem:[%s2] sm:$0x1]
    %v80 = vperm.slane %v78, 0
    %v82 = vadd.f32 %v80, %v76
    %v83 = vmul.f32 %v49, %v82
    %v85 = vsel %vm54, 1.0, 0
    %v88 = vsel %vm54, %v83, 0
    %90 = vmatpush.xpose.msra.mxu0 0.0
    %91 = vmatpush.xpose.msra.mxu0 0.0
    %92 = vmatpush.xpose.msra.mxu0 0.0
    %93 = vmatpush.xpose.msra.mxu0 0.0
    %94 = vmatpush.xpose.msra.mxu0 0.0
    %95 = vmatpush.xpose.msra.mxu0 0.0
    %96 = vmatpush.xpose.msra.mxu0 0.0
    %97 = vmatpush.xpose.msra.mxu0 0.0
    %98 = vmatpush.xpose.msra.mxu0 0.0
    %99 = vmatpush.xpose.msra.mxu0 0.0
    %100 = vmatpush.xpose.msra.mxu0 0.0
    %101 = vmatpush.xpose.msra.mxu0 0.0
    %102 = vmatpush.xpose.msra.mxu0 0.0
    %103 = vmatpush.xpose.msra.mxu0 0.0
    %104 = vmatpush.xpose.msra.mxu0 0.0
    %105 = vmatpush.xpose.msra.mxu0 %v88
    %106 = vmatmul.f32.gmra.mxu0 %v85
    %v107 = vpop.f32.mrf.mxu0
    %v108 = vadd.f32 0.0, %v107
    %109 = vdwg.mxu0
    %s110 = sld [smem:[#allocation2]]
    %v111 = vstv %s110
    %v112 = vadd.f32 %v111, %v108
    %vm113 = vcmask 57344
    %114 = vst.msk [vmem:[#allocation8] sm:$0x1] %vm113, %v112
    // Predicated region
    $region26: #{tpu_custom_call.1} parent=1 // pred_check
      _
    $region27: #{tpu_custom_call.1} parent=1 // pred_check_branch
      %116 = sbr.rel (0) target = $region29
    $region28: #{tpu_custom_call.1} parent=1 // pred_region
      %118 = vsyncadd [#allocation5], 0
      %s120 = sshll.u32 [#allocation8], 4
      %s121 = int_to_ptr.vmem [resolvable:$true] %s120
      %s122 = sshll.u32 %s4, 4
      %s123 = int_to_ptr.hbm [resolvable:$true] %s122
      %125 = dma.vmem_to_hbm [thread:$0]  %s121, 16, %s123, [#allocation5]
    $region29: #{tpu_custom_call.1} parent=1 // pred_fallthru
      _
    // Predicated region
    $region30: #{tpu_custom_call.1} parent=1 // pred_check
      _
    $region31: #{tpu_custom_call.1} parent=1 // pred_check_branch
      %127 = sbr.rel (0) target = $region33
    $region32: #{tpu_custom_call.1} parent=1 // pred_region
      %129 = dma.done [#allocation5], 16
    $region33: #{tpu_custom_call.1} parent=1 // pred_fallthru
      _
    %130 = vsyncpa [#allocation4], 1
    %131 = vsyncpa [#allocation7], 1
    %132 = vsyncpa [#allocation5], 1

</llo_original>
